<compile_context>
chip_gen: v7x
topology: tpu7x:2x2x1
jax: 0.10.0
libtpu: 0.0.40
codegen_flags: <defaults>
</compile_context>

<pallas_src>
import jax
import jax.numpy as jnp
from jax.experimental import pallas as pl
from jax.experimental.pallas import tpu as pltpu

BN_EPS = 1e-5
FEAT = 128          # frozen backbone output width
DEFAULT_TK = 16384  # default K tile for real backbones (K ~ 1e5+)


def _ds_kernel(x_ref, wpre_ref, head1_ref, head2_ref, o_ref, acc_ref):
    k = pl.program_id(0)

    # --- init f32 accumulator for the backbone projection ---
    @pl.when(k == 0)
    def _():
        acc_ref[...] = jnp.zeros_like(acc_ref)

    # --- frozen backbone stand-in, K-tiled: (B,tk)bf16 @ (tk,128)bf16 -> f32 acc ---
    acc_ref[...] += jnp.dot(x_ref[...], wpre_ref[...],
                            preferred_element_type=jnp.float32)

    # --- epilogue (tiny): projection head + BNs on the whole batch ---
    @pl.when(k == pl.num_programs(0) - 1)
    def _():
        feat = acc_ref[...]

        n_in = head1_ref.shape[0] - 2        # 128
        h1 = head1_ref.shape[1]              # 64
        w1 = head1_ref[0:n_in, :]            # (128, 64)
        g1 = head1_ref[n_in:n_in + 1, :]     # (1, 64)
        b1 = head1_ref[n_in + 1:n_in + 2, :]

        # LinearLayer(128 -> 64, bias=False because use_bn=True)
        h = jnp.dot(feat, w1, preferred_element_type=jnp.float32)

        # BatchNorm1d(64), training mode (biased batch variance), folded to one FMA
        mu1 = jnp.mean(h, axis=0, keepdims=True)
        var1 = jnp.mean((h - mu1) * (h - mu1), axis=0, keepdims=True)
        scale1 = g1 * jax.lax.rsqrt(var1 + BN_EPS)
        shift1 = b1 - mu1 * scale1
        h = jnp.maximum(h * scale1 + shift1, 0.0)          # fused BN + ReLU

        w2 = head2_ref[0:h1, :]              # (64, 2)
        g2 = head2_ref[h1:h1 + 1, :]         # (1, 2)
        b2 = head2_ref[h1 + 1:h1 + 2, :]

        # LinearLayer(64 -> 2, bias=False)
        o = jnp.dot(h, w2, preferred_element_type=jnp.float32)

        # BatchNorm1d(2), training mode, folded to one FMA
        mu2 = jnp.mean(o, axis=0, keepdims=True)
        var2 = jnp.mean((o - mu2) * (o - mu2), axis=0, keepdims=True)
        scale2 = g2 * jax.lax.rsqrt(var2 + BN_EPS)
        shift2 = b2 - mu2 * scale2
        o_ref[...] = o * scale2 + shift2


def _pick_vmem_limit():
    """Generation-aware scoped-VMEM limit (v5e/v6e: 128 MiB parts; v7x: 64 MiB)."""
    try:
        cap = pltpu.get_tpu_info().vmem_capacity_bytes
    except Exception:
        return 32 << 20
    if cap >= (128 << 20):
        return 96 << 20
    return 40 << 20


def prepare_params(params, *, tk=DEFAULT_TK):
    """One-time weight prep (hoisted out of the forward path).

    - zero-pads the frozen backbone weight along K to a multiple of the K-tile,
    - casts it to bf16 (the dominant HBM stream),
    - packs the six tiny head/BN params into two VMEM slabs.
    """
    wpre, w1, g1, b1, w2, g2, b2 = params
    K = wpre.shape[0]

    # K-tile must be a multiple of 128 lanes; don't over-pad tiny inputs.
    k_rounded = ((K + 127) // 128) * 128
    tk = min(((tk + 127) // 128) * 128, k_rounded)
    n_k = pl.cdiv(K, tk)
    K_pad = n_k * tk
    if K_pad != K:
        wpre = jnp.pad(wpre, ((0, K_pad - K), (0, 0)))
    wpre_bf16 = wpre.astype(jnp.bfloat16)

    head1 = jnp.concatenate([w1, g1, b1], axis=0).astype(jnp.float32)   # (130, 64)
    head2 = jnp.concatenate([w2, g2, b2], axis=0).astype(jnp.float32)   # (66, 2)

    return dict(wpre=wpre_bf16, head1=head1, head2=head2,
                K=K, K_pad=K_pad, tk=tk, n_k=n_k)


def custom_ds_model_forward(x_nchw, prep):
    """x_nchw: (B, C, H, W) float32 -> (B, 2) float32."""
    B = x_nchw.shape[0]
    x_flat = x_nchw.reshape(B, -1).astype(jnp.float32)
    K, K_pad, tk, n_k = prep["K"], prep["K_pad"], prep["tk"], prep["n_k"]
    assert x_flat.shape[1] == K, (x_flat.shape, K)

    if K_pad != K:
        x_flat = jnp.pad(x_flat, ((0, 0), (0, K_pad - K)))
    x_bf16 = x_flat.astype(jnp.bfloat16)

    head1, head2 = prep["head1"], prep["head2"]
    H1 = head1.shape[1]     # 64
    OUT = head2.shape[1]    # 2

    cost = pl.CostEstimate(
        flops=2 * B * K_pad * FEAT + 2 * B * FEAT * H1 + 2 * B * H1 * OUT,
        transcendentals=H1 + OUT,                        # the two rsqrt rows
        bytes_accessed=2 * (B * K_pad + K_pad * FEAT)    # bf16 streams
        + 4 * (head1.size + head2.size + B * OUT),
    )

    return pl.pallas_call(
        _ds_kernel,
        out_shape=jax.ShapeDtypeStruct((B, OUT), jnp.float32),
        grid_spec=pltpu.PrefetchScalarGridSpec(
            num_scalar_prefetch=0,
            grid=(n_k,),
            in_specs=[
                pl.BlockSpec((B, tk), lambda k: (0, k)),       # x tile (streams over K)
                pl.BlockSpec((tk, FEAT), lambda k: (k, 0)),    # backbone weight tile
                pl.BlockSpec(head1.shape, lambda k: (0, 0)),   # packed W1|gamma1|beta1
                pl.BlockSpec(head2.shape, lambda k: (0, 0)),   # packed W2|gamma2|beta2
            ],
            out_specs=pl.BlockSpec((B, OUT), lambda k: (0, 0)),
            scratch_shapes=[pltpu.VMEM((B, FEAT), jnp.float32)],
        ),
        compiler_params=pltpu.CompilerParams(
            dimension_semantics=("arbitrary",),        # K is a reduction axis
            vmem_limit_bytes=_pick_vmem_limit(),
        ),
        cost_estimate=cost,
    )(x_bf16, prep["wpre"], head1, head2)


def init_params(key, in_dim, feat_dim=FEAT, hidden=64, out_dim=2):
    # NOTE: w1/w2 are stored (in, out); torch nn.Linear.weight is (out, in) --
    # transpose when importing a real PyTorch checkpoint.
    k0, k1, k2 = jax.random.split(key, 3)
    wpre = jax.random.normal(k0, (in_dim, feat_dim), jnp.float32) / jnp.sqrt(in_dim)
    w1 = jax.random.normal(k1, (feat_dim, hidden), jnp.float32) / jnp.sqrt(feat_dim)
    w2 = jax.random.normal(k2, (hidden, out_dim), jnp.float32) / jnp.sqrt(hidden)
    g1 = jnp.ones((1, hidden), jnp.float32)   # BatchNorm1d init: weight=1
    b1 = jnp.zeros((1, hidden), jnp.float32)  #                    bias=0
    g2 = jnp.ones((1, out_dim), jnp.float32)
    b2 = jnp.zeros((1, out_dim), jnp.float32)
    return (wpre, w1, g1, b1, w2, g2, b2)


def reference_forward(x_nchw, params):
    """Pure-JAX reference (same bf16 operands for the dominant backbone matmul)."""
    B = x_nchw.shape[0]
    x_flat = x_nchw.reshape(B, -1).astype(jnp.float32)
    wpre, w1, g1, b1, w2, g2, b2 = params
    feat = jnp.dot(x_flat.astype(jnp.bfloat16), wpre.astype(jnp.bfloat16),
                   preferred_element_type=jnp.float32)
    h = feat @ w1
    mu1 = h.mean(0, keepdims=True)
    var1 = ((h - mu1) ** 2).mean(0, keepdims=True)
    h = jnp.maximum((h - mu1) * jax.lax.rsqrt(var1 + BN_EPS) * g1 + b1, 0.0)
    o = h @ w2
    mu2 = o.mean(0, keepdims=True)
    var2 = ((o - mu2) ** 2).mean(0, keepdims=True)
    return (o - mu2) * jax.lax.rsqrt(var2 + BN_EPS) * g2 + b2


if __name__ == "__main__":
    key = jax.random.PRNGKey(0)
    kx, kp = jax.random.split(key)

    B, C, H, W = 8, 4, 16, 16            # K = 1024
    x = jax.random.normal(kx, (B, C, H, W), jnp.float32)
    params = init_params(kp, in_dim=C * H * W)

    # Small tk here so the multi-step K pipeline (init / accumulate / epilogue)
    # is actually exercised; production default is tk=16384.
    prep = prepare_params(params, tk=512)

    out = custom_ds_model_forward(x, prep)
    out = jax.block_until_ready(out)
    assert out.shape == (B, 2) and out.dtype == jnp.float32

    ref = jax.block_until_ready(reference_forward(x, params))
    assert jnp.allclose(out, ref, rtol=1e-2, atol=1e-2), (out, ref)

    print("KERNEL_OK")
</pallas_src>

<mosaic_0001>
module attributes {stable_mosaic.version = 11 : i64} {
  func.func @_ds_kernel(%arg0: i32, %arg1: memref<8x512xbf16, #tpu.memory_space<vmem>>, %arg2: memref<512x128xbf16, #tpu.memory_space<vmem>>, %arg3: memref<130x64xf32, #tpu.memory_space<vmem>>, %arg4: memref<66x2xf32, #tpu.memory_space<vmem>>, %arg5: memref<8x2xf32, #tpu.memory_space<vmem>>, %arg6: memref<8x128xf32, #tpu.memory_space<vmem>>) attributes {dimension_semantics = [#tpu.dimension_semantics<arbitrary>], iteration_bounds = array<i64: 2>, scalar_prefetch = 0 : i64, scratch_operands = 1 : i64, tpu.core_type = #tpu.core_type<tc>, window_params = [{transform_indices = @transform_0, window_bounds = array<i64: 8, 512>}, {transform_indices = @transform_1, window_bounds = array<i64: 512, 128>}, {pipeline_mode = #tpu.pipeline_mode<synchronous>, transform_indices = @transform_2, window_bounds = array<i64: 130, 64>}, {pipeline_mode = #tpu.pipeline_mode<synchronous>, transform_indices = @transform_3, window_bounds = array<i64: 66, 2>}, {pipeline_mode = #tpu.pipeline_mode<synchronous>, transform_indices = @transform_4, window_bounds = array<i64: 8, 2>}]} {
    %c0_i32 = arith.constant 0 : i32
    %0 = arith.cmpi eq, %arg0, %c0_i32 : i32
    %1 = arith.extui %0 : i1 to i32
    %c0_i32_0 = arith.constant 0 : i32
    %2 = arith.cmpi ne, %1, %c0_i32_0 : i32
    scf.if %2 {
      %cst_9 = arith.constant 0.000000e+00 : f32
      %12 = vector.broadcast %cst_9 : f32 to vector<8x128xf32>
      %c0_10 = arith.constant 0 : index
      %c0_11 = arith.constant 0 : index
      %13 = vector.load %arg6[%c0_10, %c0_11] : memref<8x128xf32, #tpu.memory_space<vmem>>, vector<8x128xf32>
      tpu.vector_store %arg6[%c0_10, %c0_11], %12 {strides = array<i32>} : memref<8x128xf32, #tpu.memory_space<vmem>>, vector<8x128xf32>,
    } else {
    }
    %c0 = arith.constant 0 : index
    %c0_1 = arith.constant 0 : index
    %3 = vector.load %arg6[%c0, %c0_1] : memref<8x128xf32, #tpu.memory_space<vmem>>, vector<8x128xf32>
    %c0_2 = arith.constant 0 : index
    %c0_3 = arith.constant 0 : index
    %4 = vector.load %arg1[%c0_2, %c0_3] : memref<8x512xbf16, #tpu.memory_space<vmem>>, vector<8x512xbf16>
    %c0_4 = arith.constant 0 : index
    %c0_5 = arith.constant 0 : index
    %5 = vector.load %arg2[%c0_4, %c0_5] : memref<512x128xbf16, #tpu.memory_space<vmem>>, vector<512x128xbf16>
    %cst = arith.constant dense<0.000000e+00> : vector<8x128xf32>
    %6 = tpu.matmul %4, %5, %cst {dimension_numbers = #tpu.dot_dimension_numbers<[1], [0], [0], [1], [0, 0, 1, 1], [], []>} : vector<8x512xbf16>, vector<512x128xbf16>, vector<8x128xf32> -> vector<8x128xf32>
    %7 = arith.addf %3, %6 : vector<8x128xf32>
    %c0_6 = arith.constant 0 : index
    %c0_7 = arith.constant 0 : index
    %8 = vector.load %arg6[%c0_6, %c0_7] : memref<8x128xf32, #tpu.memory_space<vmem>>, vector<8x128xf32>
    tpu.vector_store %arg6[%c0_6, %c0_7], %7 {strides = array<i32>} : memref<8x128xf32, #tpu.memory_space<vmem>>, vector<8x128xf32>,
    %c1_i32 = arith.constant 1 : i32
    %9 = arith.cmpi eq, %arg0, %c1_i32 : i32
    %10 = arith.extui %9 : i1 to i32
    %c0_i32_8 = arith.constant 0 : i32
    %11 = arith.cmpi ne, %10, %c0_i32_8 : i32
    scf.if %11 {
      %c0_9 = arith.constant 0 : index
      %c0_10 = arith.constant 0 : index
      %12 = vector.load %arg6[%c0_9, %c0_10] : memref<8x128xf32, #tpu.memory_space<vmem>>, vector<8x128xf32>
      %c0_11 = arith.constant 0 : index
      %c0_12 = arith.constant 0 : index
      %13 = vector.load %arg3[%c0_11, %c0_12] : memref<130x64xf32, #tpu.memory_space<vmem>>, vector<128x64xf32>
      %c128 = arith.constant 128 : index
      %c0_13 = arith.constant 0 : index
      %14 = vector.load %arg3[%c128, %c0_13] : memref<130x64xf32, #tpu.memory_space<vmem>>, vector<1x64xf32>
      %c129 = arith.constant 129 : index
      %c0_14 = arith.constant 0 : index
      %15 = vector.load %arg3[%c129, %c0_14] : memref<130x64xf32, #tpu.memory_space<vmem>>, vector<1x64xf32>
      %cst_15 = arith.constant dense<0.000000e+00> : vector<8x64xf32>
      %16 = tpu.matmul %12, %13, %cst_15 {dimension_numbers = #tpu.dot_dimension_numbers<[1], [0], [0], [1], [0, 0, 1, 1], [], []>} : vector<8x128xf32>, vector<128x64xf32>, vector<8x64xf32> -> vector<8x64xf32>
      %cst_16 = arith.constant dense<0.000000e+00> : vector<64xf32>
      %17 = vector.multi_reduction <add>, %16, %cst_16 [0] : vector<8x64xf32> to vector<64xf32>
      %18 = vector.shape_cast %17 : vector<64xf32> to vector<1x64xf32>
      %cst_17 = arith.constant 8.000000e+00 : f32
      %19 = vector.broadcast %cst_17 : f32 to vector<1x64xf32>
      %20 = arith.divf %18, %19 : vector<1x64xf32>
      %21 = vector.broadcast %20 : vector<1x64xf32> to vector<8x64xf32>
      %22 = arith.subf %16, %21 : vector<8x64xf32>
      %23 = vector.broadcast %20 : vector<1x64xf32> to vector<8x64xf32>
      %24 = arith.subf %16, %23 : vector<8x64xf32>
      %25 = arith.mulf %22, %24 : vector<8x64xf32>
      %cst_18 = arith.constant dense<0.000000e+00> : vector<64xf32>
      %26 = vector.multi_reduction <add>, %25, %cst_18 [0] : vector<8x64xf32> to vector<64xf32>
      %27 = vector.shape_cast %26 : vector<64xf32> to vector<1x64xf32>
      %cst_19 = arith.constant 8.000000e+00 : f32
      %28 = vector.broadcast %cst_19 : f32 to vector<1x64xf32>
      %29 = arith.divf %27, %28 : vector<1x64xf32>
      %cst_20 = arith.constant 9.99999974E-6 : f32
      %30 = vector.broadcast %cst_20 : f32 to vector<1x64xf32>
      %31 = arith.addf %29, %30 : vector<1x64xf32>
      %32 = math.rsqrt %31 : vector<1x64xf32>
      %33 = arith.mulf %14, %32 : vector<1x64xf32>
      %34 = arith.mulf %20, %33 : vector<1x64xf32>
      %35 = arith.subf %15, %34 : vector<1x64xf32>
      %36 = vector.broadcast %33 : vector<1x64xf32> to vector<8x64xf32>
      %37 = arith.mulf %16, %36 : vector<8x64xf32>
      %38 = vector.broadcast %35 : vector<1x64xf32> to vector<8x64xf32>
      %39 = arith.addf %37, %38 : vector<8x64xf32>
      %cst_21 = arith.constant 0.000000e+00 : f32
      %40 = vector.broadcast %cst_21 : f32 to vector<8x64xf32>
      %41 = arith.maximumf %39, %40 : vector<8x64xf32>
      %c0_22 = arith.constant 0 : index
      %c0_23 = arith.constant 0 : index
      %42 = vector.load %arg4[%c0_22, %c0_23] : memref<66x2xf32, #tpu.memory_space<vmem>>, vector<64x2xf32>
      %c64 = arith.constant 64 : index
      %c0_24 = arith.constant 0 : index
      %43 = vector.load %arg4[%c64, %c0_24] : memref<66x2xf32, #tpu.memory_space<vmem>>, vector<1x2xf32>
      %c65 = arith.constant 65 : index
      %c0_25 = arith.constant 0 : index
      %44 = vector.load %arg4[%c65, %c0_25] : memref<66x2xf32, #tpu.memory_space<vmem>>, vector<1x2xf32>
      %cst_26 = arith.constant dense<0.000000e+00> : vector<8x2xf32>
      %45 = tpu.matmul %41, %42, %cst_26 {dimension_numbers = #tpu.dot_dimension_numbers<[1], [0], [0], [1], [0, 0, 1, 1], [], []>} : vector<8x64xf32>, vector<64x2xf32>, vector<8x2xf32> -> vector<8x2xf32>
      %cst_27 = arith.constant dense<0.000000e+00> : vector<2xf32>
      %46 = vector.multi_reduction <add>, %45, %cst_27 [0] : vector<8x2xf32> to vector<2xf32>
      %47 = vector.shape_cast %46 : vector<2xf32> to vector<1x2xf32>
      %cst_28 = arith.constant 8.000000e+00 : f32
      %48 = vector.broadcast %cst_28 : f32 to vector<1x2xf32>
      %49 = arith.divf %47, %48 : vector<1x2xf32>
      %50 = vector.broadcast %49 : vector<1x2xf32> to vector<8x2xf32>
      %51 = arith.subf %45, %50 : vector<8x2xf32>
      %52 = vector.broadcast %49 : vector<1x2xf32> to vector<8x2xf32>
      %53 = arith.subf %45, %52 : vector<8x2xf32>
      %54 = arith.mulf %51, %53 : vector<8x2xf32>
      %cst_29 = arith.constant dense<0.000000e+00> : vector<2xf32>
      %55 = vector.multi_reduction <add>, %54, %cst_29 [0] : vector<8x2xf32> to vector<2xf32>
      %56 = vector.shape_cast %55 : vector<2xf32> to vector<1x2xf32>
      %cst_30 = arith.constant 8.000000e+00 : f32
      %57 = vector.broadcast %cst_30 : f32 to vector<1x2xf32>
      %58 = arith.divf %56, %57 : vector<1x2xf32>
      %cst_31 = arith.constant 9.99999974E-6 : f32
      %59 = vector.broadcast %cst_31 : f32 to vector<1x2xf32>
      %60 = arith.addf %58, %59 : vector<1x2xf32>
      %61 = math.rsqrt %60 : vector<1x2xf32>
      %62 = arith.mulf %43, %61 : vector<1x2xf32>
      %63 = arith.mulf %49, %62 : vector<1x2xf32>
      %64 = arith.subf %44, %63 : vector<1x2xf32>
      %65 = vector.broadcast %62 : vector<1x2xf32> to vector<8x2xf32>
      %66 = arith.mulf %45, %65 : vector<8x2xf32>
      %67 = vector.broadcast %64 : vector<1x2xf32> to vector<8x2xf32>
      %68 = arith.addf %66, %67 : vector<8x2xf32>
      %c0_32 = arith.constant 0 : index
      %c0_33 = arith.constant 0 : index
      %69 = vector.load %arg5[%c0_32, %c0_33] : memref<8x2xf32, #tpu.memory_space<vmem>>, vector<8x2xf32>
      tpu.vector_store %arg5[%c0_32, %c0_33], %68 {strides = array<i32>} : memref<8x2xf32, #tpu.memory_space<vmem>>, vector<8x2xf32>,
    } else {
    }
    return
  }
  func.func @transform_0(%arg0: i32) -> (i32, i32) {
    %c0_i32 = arith.constant 0 : i32
    %c0_i32_0 = arith.constant 0 : i32
    return %c0_i32, %arg0 : i32, i32
  }
  func.func @transform_1(%arg0: i32) -> (i32, i32) {
    %c0_i32 = arith.constant 0 : i32
    %c0_i32_0 = arith.constant 0 : i32
    return %arg0, %c0_i32 : i32, i32
  }
  func.func @transform_2(%arg0: i32) -> (i32, i32) {
    %c0_i32 = arith.constant 0 : i32
    %c0_i32_0 = arith.constant 0 : i32
    %c0_i32_1 = arith.constant 0 : i32
    return %c0_i32, %c0_i32_0 : i32, i32
  }
  func.func @transform_3(%arg0: i32) -> (i32, i32) {
    %c0_i32 = arith.constant 0 : i32
    %c0_i32_0 = arith.constant 0 : i32
    %c0_i32_1 = arith.constant 0 : i32
    return %c0_i32, %c0_i32_0 : i32, i32
  }
  func.func @transform_4(%arg0: i32) -> (i32, i32) {
    %c0_i32 = arith.constant 0 : i32
    %c0_i32_0 = arith.constant 0 : i32
    %c0_i32_1 = arith.constant 0 : i32
    return %c0_i32, %c0_i32_0 : i32, i32
  }
}

</mosaic_0001>

<llo_original>
// kernel: tpu_custom_call.1
$region0: #{tpu_custom_call.1}
  #allocation0 [shape = 'u32[]', space=smem, size = 0x4, offset = 0x4, fixed_abs, tag = 'smem constant byte address 0x4 - core index']
  #allocation1 [shape = 'u32[144,128]{1,0:T(1,128)}', space=vmem, size = 0x12000, scoped, tag = 'internal scratch']
  #allocation2 [shape = 'f32[8,128]{1,0:T(8,128)}', space=vmem, size = 0x1000, scoped, tag = 'scratch operand']
  %s0 = inlined_call_operand.vmem [shape: bf16[8,1024], index: 0, kind: input, shape index: {}]
  %s1 = inlined_call_operand.hbm [shape: bf16[1024,128], index: 1, kind: input, shape index: {}]
  %s2 = inlined_call_operand.vmem [shape: f32[130,64], index: 2, kind: input, shape index: {}]
  %s3 = inlined_call_operand.vmem [shape: f32[66,2], index: 3, kind: input, shape index: {}]
  %s4 = inlined_call_operand.vmem [shape: f32[8,2], index: 4, kind: output, shape index: {}]
  %s5 = sld [smem:[#allocation0]]
  $region61: #{tpu_custom_call.1} parent=0
    _
  %s7 = ssub.s32 1, %s5
  %s8 = scalar_select 0, %s7, %s5
  $region1: #{tpu_custom_call.1} parent=0
    #allocation3 [shape = 'u8[262144]{0}', space=vmem, size = 0x40000, scoped, tag = 'input window, operand 1']
    #allocation4 [shape = 's32[2]{0}', space=sflag, size = 0x8, scoped, tag = 'scoped memory for tpu_custom_call.1']
    %9 = vsyncpa [#allocation4], 0
    %s10 = scalar_lea.sflag [#allocation4], 1
    %11 = vsyncpa %s10, 0
    loop: start=0, step=1, limit=4
    $region2: #{tpu_custom_call.1} parent=1 // loop_pre_header
      _
    $region3: #{tpu_custom_call.1} parent=1 // loop_header
      %s13 = sphi 0, %s17
      %p14 = scmp.ge.s32.totalorder %s13, 4
      %s23 = sphi 0, %s25
      %s26 = sphi 0, %s23
      %s27 = sphi 0, %s26
      %s43 = sphi 0, %s27
      %s49 = sphi 0, %s51
      %s52 = sphi 0, %s49
      %s53 = sphi 0, %s52
      %s69 = sphi 0, %s53
      %s73 = sphi 0, %s73
      %s75 = sphi 0, %s73
      %s76 = sphi 0, %s75
      %s90 = sphi 0, %s76
      %s94 = sphi 0, %s94
      %s96 = sphi 0, %s94
      %s97 = sphi 0, %s96
      %s111 = sphi 0, %s97
      %s115 = sphi 0, %s115
      %s117 = sphi 0, %s115
      %s118 = sphi 0, %s117
      %s132 = sphi 0, %s118
    $region4: #{tpu_custom_call.1} parent=1 // loop_header_branch
      %16 = sbr.rel (%p14) target = $region8
    $region5: #{tpu_custom_call.1} parent=1 // loop_body
      %s18 = ssub.s32 %s13, 1
      %s19 = ssub.s32 %s13, 2
      %s20 = sadd.s32 %s13, 1
      %s21 = ssub.s32 %s13, %s20
      %p22 = scmp.eq.s32.totalorder %s21, 0
      %s24 = sadd.s32 %s23, 1
      %s25 = scalar_select %p22, %s23, %s24
      %p28 = pneg %p22
      %p29 = scmp.eq.s32.totalorder %s13, 1
      %p30 = por %p28, %p29
      %p31 = scmp.ne.s32.totalorder %s23, %s26
      %p32 = scmp.eq.s32.totalorder %s13, 0
      %p33 = por %p31, %p32
      %p34 = scmp.ne.s32.totalorder %s23, %s26
      %p35 = scmp.eq.s32.totalorder %s18, 1
      %p36 = por %p34, %p35
      %p37 = scmp.ne.s32.totalorder %s26, %s27
      %p38 = scmp.eq.s32.totalorder %s18, 0
      %p39 = por %p37, %p38
      %p40 = scmp.ne.s32.totalorder %s26, %s27
      %p41 = scmp.eq.s32.totalorder %s19, 1
      %p42 = por %p40, %p41
      %p44 = scmp.ne.s32.totalorder %s27, %s43
      %p45 = scmp.eq.s32.totalorder %s19, 0
      %p46 = por %p44, %p45
      %s47 = ssub.s32 %s13, %s20
      %p48 = scmp.eq.s32.totalorder %s47, 0
      %s50 = sadd.s32 %s49, 1
      %s51 = scalar_select %p48, %s49, %s50
      %p54 = pneg %p48
      %p55 = scmp.eq.s32.totalorder %s13, 1
      %p56 = por %p54, %p55
      %p57 = scmp.ne.s32.totalorder %s49, %s52
      %p58 = scmp.eq.s32.totalorder %s13, 0
      %p59 = por %p57, %p58
      %p60 = scmp.ne.s32.totalorder %s49, %s52
      %p61 = scmp.eq.s32.totalorder %s18, 1
      %p62 = por %p60, %p61
      %p63 = scmp.ne.s32.totalorder %s52, %s53
      %p64 = scmp.eq.s32.totalorder %s18, 0
      %p65 = por %p63, %p64
      %p66 = scmp.ne.s32.totalorder %s52, %s53
      %p67 = scmp.eq.s32.totalorder %s19, 1
      %p68 = por %p66, %p67
      %p70 = scmp.ne.s32.totalorder %s53, %s69
      %p71 = scmp.eq.s32.totalorder %s19, 0
      %p72 = por %p70, %p71
      %s74 = sadd.s32 %s73, 1
      %p77 = scmp.eq.s32.totalorder %s13, 1
      %p78 = scmp.ne.s32.totalorder %s73, %s75
      %p79 = scmp.eq.s32.totalorder %s13, 0
      %p80 = por %p78, %p79
      %p81 = scmp.ne.s32.totalorder %s73, %s75
      %p82 = scmp.eq.s32.totalorder %s18, 1
      %p83 = por %p81, %p82
      %p84 = scmp.ne.s32.totalorder %s75, %s76
      %p85 = scmp.eq.s32.totalorder %s18, 0
      %p86 = por %p84, %p85
      %p87 = scmp.ne.s32.totalorder %s75, %s76
      %p88 = scmp.eq.s32.totalorder %s19, 1
      %p89 = por %p87, %p88
      %p91 = scmp.ne.s32.totalorder %s76, %s90
      %p92 = scmp.eq.s32.totalorder %s19, 0
      %p93 = por %p91, %p92
      %s95 = sadd.s32 %s94, 1
      %p98 = scmp.eq.s32.totalorder %s13, 1
      %p99 = scmp.ne.s32.totalorder %s94, %s96
      %p100 = scmp.eq.s32.totalorder %s13, 0
      %p101 = por %p99, %p100
      %p102 = scmp.ne.s32.totalorder %s94, %s96
      %p103 = scmp.eq.s32.totalorder %s18, 1
      %p104 = por %p102, %p103
      %p105 = scmp.ne.s32.totalorder %s96, %s97
      %p106 = scmp.eq.s32.totalorder %s18, 0
      %p107 = por %p105, %p106
      %p108 = scmp.ne.s32.totalorder %s96, %s97
      %p109 = scmp.eq.s32.totalorder %s19, 1
      %p110 = por %p108, %p109
      %p112 = scmp.ne.s32.totalorder %s97, %s111
      %p113 = scmp.eq.s32.totalorder %s19, 0
      %p114 = por %p112, %p113
      %s116 = sadd.s32 %s115, 1
      %p119 = scmp.eq.s32.totalorder %s13, 1
      %p120 = scmp.ne.s32.totalorder %s115, %s117
      %p121 = scmp.eq.s32.totalorder %s13, 0
      %p122 = por %p120, %p121
      %p123 = scmp.ne.s32.totalorder %s115, %s117
      %p124 = scmp.eq.s32.totalorder %s18, 1
      %p125 = por %p123, %p124
      %p126 = scmp.ne.s32.totalorder %s117, %s118
      %p127 = scmp.eq.s32.totalorder %s18, 0
      %p128 = por %p126, %p127
      %p129 = scmp.ne.s32.totalorder %s117, %s118
      %p130 = scmp.eq.s32.totalorder %s19, 1
      %p131 = por %p129, %p130
      %p133 = scmp.ne.s32.totalorder %s118, %s132
      %p134 = scmp.eq.s32.totalorder %s19, 0
      %p135 = por %p133, %p134
      %p136 = scmp.le.s32.totalorder 1, %s13
      %p137 = scmp.lt.s32.totalorder %s13, 3
      %p138 = pnand %p136, %p137
      %p139 = pneg %p138
      // Predicated region
      $region9: #{tpu_custom_call.1} parent=5 // pred_check
        _
      $region10: #{tpu_custom_call.1} parent=5 // pred_check_branch
        %141 = sbr.rel (%p138) target = $region12
      $region11: #{tpu_custom_call.1} parent=5 // pred_region
        %s142 = ssub.s32 %s13, 1
        // Predicated region
        $region13: #{tpu_custom_call.1} parent=11 // pred_check
          %p143 = pneg %p86
        $region14: #{tpu_custom_call.1} parent=11 // pred_check_branch
          %145 = sbr.rel (%p143) target = $region16
        $region15: #{tpu_custom_call.1} parent=11 // pred_region
          _
        $region16: #{tpu_custom_call.1} parent=11 // pred_fallthru
          _
        // Predicated region
        $region17: #{tpu_custom_call.1} parent=11 // pred_check
          %p146 = pneg %p107
        $region18: #{tpu_custom_call.1} parent=11 // pred_check_branch
          %148 = sbr.rel (%p146) target = $region20
        $region19: #{tpu_custom_call.1} parent=11 // pred_region
          _
        $region20: #{tpu_custom_call.1} parent=11 // pred_fallthru
          _
      $region12: #{tpu_custom_call.1} parent=5 // pred_fallthru
        _
      %p149 = scmp.lt.s32.totalorder %s13, 2
      // Predicated region
      $region21: #{tpu_custom_call.1} parent=5 // pred_check
        %p150 = pneg %p149
      $region22: #{tpu_custom_call.1} parent=5 // pred_check_branch
        %152 = sbr.rel (%p150) target = $region24
      $region23: #{tpu_custom_call.1} parent=5 // pred_region
        // Predicated region
        $region25: #{tpu_custom_call.1} parent=23 // pred_check
          %p153 = pneg %p33
        $region26: #{tpu_custom_call.1} parent=23 // pred_check_branch
          %155 = sbr.rel (%p153) target = $region28
        $region27: #{tpu_custom_call.1} parent=23 // pred_region
          %s156 = smul.u32 4, %s13
          %p157 = scmp.lt.s32.totalorder %s156, 7
          %s158 = scalar_select %p157, %s156, 7
          %s159 = smul.addr %s158, 4
          %s160 = scalar_lea.vmem %s0, %s159
          %s161 = smul.u32 4, %s13
        $region28: #{tpu_custom_call.1} parent=23 // pred_fallthru
          _
        // Predicated region
        $region29: #{tpu_custom_call.1} parent=23 // pred_check
          %p162 = pneg %p59
        $region30: #{tpu_custom_call.1} parent=23 // pred_check_branch
          %164 = sbr.rel (%p162) target = $region32
        $region31: #{tpu_custom_call.1} parent=23 // pred_region
          %s165 = sand.u32 %s49, 1
          %s166 = scalar_lea.sflag [#allocation4], %s165
          %s167 = sand.u32 %s49, 1
          %s168 = smul.addr %s167, 256
          %s169 = scalar_lea.vmem [#allocation3], %s168
          %s170 = smul.u32 64, %s13
          %s172 = ssub.s32 4096, 4096
          %173 = vsyncadd %s166, %s172
          %s174 = smul.addr %s170, 64
          %s175 = scalar_lea.hbm %s1, %s174
          %s176 = sshll.u32 %s169, 4
          %s177 = int_to_ptr.vmem [resolvable:$true] %s176
          %182 = dma.hbm_to_vmem [thread:$0]  %s175, 4096, %s177, %s166, 64, 64, 4
        $region32: #{tpu_custom_call.1} parent=23 // pred_fallthru
          _
      $region24: #{tpu_custom_call.1} parent=5 // pred_fallthru
        _
      %p183 = scmp.le.s32.totalorder 1, %s13
      %p184 = scmp.lt.s32.totalorder %s13, 3
      %p185 = pnand %p183, %p184
      %p186 = pneg %p185
      // Predicated region
      $region33: #{tpu_custom_call.1} parent=5 // pred_check
        _
      $region34: #{tpu_custom_call.1} parent=5 // pred_check_branch
        %188 = sbr.rel (%p185) target = $region36
      $region35: #{tpu_custom_call.1} parent=5 // pred_region
        %s189 = ssub.s32 %s13, 1
        %s190 = sand.u32 %s52, 1
        %s191 = scalar_lea.sflag [#allocation4], %s190
        %s192 = sand.u32 %s52, 1
        %s193 = smul.addr %s192, 256
        %s194 = scalar_lea.vmem [#allocation3], %s193
        // Predicated region
        $region37: #{tpu_custom_call.1} parent=35 // pred_check
          %p195 = pneg %p65
        $region38: #{tpu_custom_call.1} parent=35 // pred_check_branch
          %197 = sbr.rel (%p195) target = $region40
        $region39: #{tpu_custom_call.1} parent=35 // pred_region
          %198 = dma.done %s191, 4096
        $region40: #{tpu_custom_call.1} parent=35 // pred_fallthru
          _
        %s199 = smul.u32 4, %s18
        %p200 = scmp.lt.s32.totalorder %s199, 7
        %s201 = scalar_select %p200, %s199, 7
        %s202 = smul.addr %s201, 4
        %s203 = scalar_lea.vmem %s0, %s202
        %p204 = pneg %p39
        %p205 = pneg %p36
        %s206 = sand.u32 %s52, 1
        %s207 = scalar_lea.sflag [#allocation4], %s206
        %s208 = sand.u32 %s52, 1
        %s209 = smul.addr %s208, 256
        %s210 = scalar_lea.vmem [#allocation3], %s209
        %p211 = pneg %p65
        %p212 = pneg %p62
        %p213 = pneg %p86
        %p214 = pneg %p83
        %p215 = pneg %p107
        %p216 = pneg %p104
        %p217 = pneg %p128
        %p218 = pneg %p125
        %s219 = smul.u32 4, %s18
        %p220 = scmp.lt.s32.totalorder %s219, 7
        %s221 = scalar_select %p220, %s219, 7
        %s222 = smul.addr %s221, 4
        %s223 = scalar_lea.vmem %s0, %s222
        %s224 = smul.u32 4, %s18
        %s225 = smul.u32 64, %s18
        %p227 = scmp.eq.s32.totalorder %s18, 0
        // Predicated region
        $region41: #{tpu_custom_call.1} parent=35 // pred_check
          %p228 = pneg %p227
        $region42: #{tpu_custom_call.1} parent=35 // pred_check_branch
          %230 = sbr.rel (%p228) target = $region44
        $region43: #{tpu_custom_call.1} parent=35 // pred_region
          %231 = vst [vmem:[#allocation2] sm:$0xff] 0.0
        $region44: #{tpu_custom_call.1} parent=35 // pred_fallthru
          _
        %v232 = vld [vmem:[#allocation2] sm:$0xff]
        %v233 = vld [vmem:[%s223] sm:$0xff]
        %v234 = vld [vmem:[%s223 + $0x8] sm:$0xff]
        %v235 = vld [vmem:[%s194] sm:$0xf]
        %v236 = vld [vmem:[%s194 + $0x4] sm:$0xf]
        %v237 = vld [vmem:[%s194 + $0x8] sm:$0xf]
        %v238 = vld [vmem:[%s194 + $0xc] sm:$0xf]
        %v239 = vld [vmem:[%s194 + $0x10] sm:$0xf]
        %v240 = vld [vmem:[%s194 + $0x14] sm:$0xf]
        %v241 = vld [vmem:[%s194 + $0x18] sm:$0xf]
        %v242 = vld [vmem:[%s194 + $0x1c] sm:$0xf]
        %v243 = vld [vmem:[%s194 + $0x20] sm:$0xf]
        %v244 = vld [vmem:[%s194 + $0x24] sm:$0xf]
        %v245 = vld [vmem:[%s194 + $0x28] sm:$0xf]
        %v246 = vld [vmem:[%s194 + $0x2c] sm:$0xf]
        %v247 = vld [vmem:[%s194 + $0x30] sm:$0xf]
        %v248 = vld [vmem:[%s194 + $0x34] sm:$0xf]
        %v249 = vld [vmem:[%s194 + $0x38] sm:$0xf]
        %v250 = vld [vmem:[%s194 + $0x3c] sm:$0xf]
        %v251 = vld [vmem:[%s194 + $0x40] sm:$0xf]
        %v252 = vld [vmem:[%s194 + $0x44] sm:$0xf]
        %v253 = vld [vmem:[%s194 + $0x48] sm:$0xf]
        %v254 = vld [vmem:[%s194 + $0x4c] sm:$0xf]
        %v255 = vld [vmem:[%s194 + $0x50] sm:$0xf]
        %v256 = vld [vmem:[%s194 + $0x54] sm:$0xf]
        %v257 = vld [vmem:[%s194 + $0x58] sm:$0xf]
        %v258 = vld [vmem:[%s194 + $0x5c] sm:$0xf]
        %v259 = vld [vmem:[%s194 + $0x60] sm:$0xf]
        %v260 = vld [vmem:[%s194 + $0x64] sm:$0xf]
        %v261 = vld [vmem:[%s194 + $0x68] sm:$0xf]
        %v262 = vld [vmem:[%s194 + $0x6c] sm:$0xf]
        %v263 = vld [vmem:[%s194 + $0x70] sm:$0xf]
        %v264 = vld [vmem:[%s194 + $0x74] sm:$0xf]
        %v265 = vld [vmem:[%s194 + $0x78] sm:$0xf]
        %v266 = vld [vmem:[%s194 + $0x7c] sm:$0xf]
        %v267 = vld [vmem:[%s194 + $0x80] sm:$0xf]
        %v268 = vld [vmem:[%s194 + $0x84] sm:$0xf]
        %v269 = vld [vmem:[%s194 + $0x88] sm:$0xf]
        %v270 = vld [vmem:[%s194 + $0x8c] sm:$0xf]
        %v271 = vld [vmem:[%s194 + $0x90] sm:$0xf]
        %v272 = vld [vmem:[%s194 + $0x94] sm:$0xf]
        %v273 = vld [vmem:[%s194 + $0x98] sm:$0xf]
        %v274 = vld [vmem:[%s194 + $0x9c] sm:$0xf]
        %v275 = vld [vmem:[%s194 + $0xa0] sm:$0xf]
        %v276 = vld [vmem:[%s194 + $0xa4] sm:$0xf]
        %v277 = vld [vmem:[%s194 + $0xa8] sm:$0xf]
        %v278 = vld [vmem:[%s194 + $0xac] sm:$0xf]
        %v279 = vld [vmem:[%s194 + $0xb0] sm:$0xf]
        %v280 = vld [vmem:[%s194 + $0xb4] sm:$0xf]
        %v281 = vld [vmem:[%s194 + $0xb8] sm:$0xf]
        %v282 = vld [vmem:[%s194 + $0xbc] sm:$0xf]
        %v283 = vld [vmem:[%s194 + $0xc0] sm:$0xf]
        %v284 = vld [vmem:[%s194 + $0xc4] sm:$0xf]
        %v285 = vld [vmem:[%s194 + $0xc8] sm:$0xf]
        %v286 = vld [vmem:[%s194 + $0xcc] sm:$0xf]
        %v287 = vld [vmem:[%s194 + $0xd0] sm:$0xf]
        %v288 = vld [vmem:[%s194 + $0xd4] sm:$0xf]
        %v289 = vld [vmem:[%s194 + $0xd8] sm:$0xf]
        %v290 = vld [vmem:[%s194 + $0xdc] sm:$0xf]
        %v291 = vld [vmem:[%s194 + $0xe0] sm:$0xf]
        %v292 = vld [vmem:[%s194 + $0xe4] sm:$0xf]
        %v293 = vld [vmem:[%s194 + $0xe8] sm:$0xf]
        %v294 = vld [vmem:[%s194 + $0xec] sm:$0xf]
        %v295 = vld [vmem:[%s194 + $0xf0] sm:$0xf]
        %v296 = vld [vmem:[%s194 + $0xf4] sm:$0xf]
        %v297 = vld [vmem:[%s194 + $0xf8] sm:$0xf]
        %v298 = vld [vmem:[%s194 + $0xfc] sm:$0xf]
        %v301 = vunpack.c.l.b16 %v233
        %v302 = vunpack.c.h.b16 %v233
        %v303 = vunpack.c.l.b16 %v234
        %v304 = vunpack.c.h.b16 %v234
        %v305 = vpack.c.b16 %v301, %v301
        %v306 = vpack.c.b16 %v302, %v302
        %v307 = vpack.c.b16 %v303, %v303
        %v308 = vpack.c.b16 %v304, %v304
        %v377 = vunpack.c.l.b16 %v235
        %v378 = vunpack.c.l.b16 %v236
        %v379 = vunpack.c.l.b16 %v237
        %v380 = vunpack.c.l.b16 %v238
        %v381 = vunpack.c.l.b16 %v239
        %v382 = vunpack.c.l.b16 %v240
        %v383 = vunpack.c.l.b16 %v241
        %v384 = vunpack.c.l.b16 %v242
        %v385 = vunpack.c.l.b16 %v243
        %v386 = vunpack.c.l.b16 %v244
        %v387 = vunpack.c.l.b16 %v245
        %v388 = vunpack.c.l.b16 %v246
        %v389 = vunpack.c.l.b16 %v247
        %v390 = vunpack.c.l.b16 %v248
        %v391 = vunpack.c.l.b16 %v249
        %v392 = vunpack.c.l.b16 %v250
        %v393 = vunpack.c.l.b16 %v251
        %v394 = vunpack.c.l.b16 %v252
        %v395 = vunpack.c.l.b16 %v253
        %v396 = vunpack.c.l.b16 %v254
        %v397 = vunpack.c.l.b16 %v255
        %v398 = vunpack.c.l.b16 %v256
        %v399 = vunpack.c.l.b16 %v257
        %v400 = vunpack.c.l.b16 %v258
        %v401 = vunpack.c.l.b16 %v259
        %v402 = vunpack.c.l.b16 %v260
        %v403 = vunpack.c.l.b16 %v261
        %v404 = vunpack.c.l.b16 %v262
        %v405 = vunpack.c.l.b16 %v263
        %v406 = vunpack.c.l.b16 %v264
        %v407 = vunpack.c.l.b16 %v265
        %v408 = vunpack.c.l.b16 %v266
        %v409 = vunpack.c.l.b16 %v267
        %v410 = vunpack.c.l.b16 %v268
        %v411 = vunpack.c.l.b16 %v269
        %v412 = vunpack.c.l.b16 %v270
        %v413 = vunpack.c.l.b16 %v271
        %v414 = vunpack.c.l.b16 %v272
        %v415 = vunpack.c.l.b16 %v273
        %v416 = vunpack.c.l.b16 %v274
        %v417 = vunpack.c.l.b16 %v275
        %v418 = vunpack.c.l.b16 %v276
        %v419 = vunpack.c.l.b16 %v277
        %v420 = vunpack.c.l.b16 %v278
        %v421 = vunpack.c.l.b16 %v279
        %v422 = vunpack.c.l.b16 %v280
        %v423 = vunpack.c.l.b16 %v281
        %v424 = vunpack.c.l.b16 %v282
        %v425 = vunpack.c.l.b16 %v283
        %v426 = vunpack.c.l.b16 %v284
        %v427 = vunpack.c.l.b16 %v285
        %v428 = vunpack.c.l.b16 %v286
        %v429 = vunpack.c.l.b16 %v287
        %v430 = vunpack.c.l.b16 %v288
        %v431 = vunpack.c.l.b16 %v289
        %v432 = vunpack.c.l.b16 %v290
        %v433 = vunpack.c.l.b16 %v291
        %v434 = vunpack.c.l.b16 %v292
        %v435 = vunpack.c.l.b16 %v293
        %v436 = vunpack.c.l.b16 %v294
        %v437 = vunpack.c.l.b16 %v295
        %v438 = vunpack.c.l.b16 %v296
        %v439 = vunpack.c.l.b16 %v297
        %v440 = vunpack.c.l.b16 %v298
        %v441 = vpack.c.b16 %v378, %v377
        %v442 = vpack.c.b16 %v380, %v379
        %v443 = vpack.c.b16 %v382, %v381
        %v444 = vpack.c.b16 %v384, %v383
        %v445 = vpack.c.b16 %v386, %v385
        %v446 = vpack.c.b16 %v388, %v387
        %v447 = vpack.c.b16 %v390, %v389
        %v448 = vpack.c.b16 %v392, %v391
        %v449 = vpack.c.b16 %v394, %v393
        %v450 = vpack.c.b16 %v396, %v395
        %v451 = vpack.c.b16 %v398, %v397
        %v452 = vpack.c.b16 %v400, %v399
        %v453 = vpack.c.b16 %v402, %v401
        %v454 = vpack.c.b16 %v404, %v403
        %v455 = vpack.c.b16 %v406, %v405
        %v456 = vpack.c.b16 %v408, %v407
        %v457 = vpack.c.b16 %v410, %v409
        %v458 = vpack.c.b16 %v412, %v411
        %v459 = vpack.c.b16 %v414, %v413
        %v460 = vpack.c.b16 %v416, %v415
        %v461 = vpack.c.b16 %v418, %v417
        %v462 = vpack.c.b16 %v420, %v419
        %v463 = vpack.c.b16 %v422, %v421
        %v464 = vpack.c.b16 %v424, %v423
        %v465 = vpack.c.b16 %v426, %v425
        %v466 = vpack.c.b16 %v428, %v427
        %v467 = vpack.c.b16 %v430, %v429
        %v468 = vpack.c.b16 %v432, %v431
        %v469 = vpack.c.b16 %v434, %v433
        %v470 = vpack.c.b16 %v436, %v435
        %v471 = vpack.c.b16 %v438, %v437
        %v472 = vpack.c.b16 %v440, %v439
        %505 = vmatprep.subr.bf16.mxu0 0
        %506 = vmatpush1.bf16.msra.mxu0 %v441
        %507 = vmatprep.subr.bf16.mxu0 0
        %508 = vmatpush1.bf16.msra.mxu0 %v442
        %509 = vmatprep.subr.bf16.mxu0 0
        %510 = vmatpush1.bf16.msra.mxu0 %v443
        %511 = vmatprep.subr.bf16.mxu0 0
        %512 = vmatpush1.bf16.msra.mxu0 %v444
        %513 = vmatprep.subr.bf16.mxu0 0
        %514 = vmatpush1.bf16.msra.mxu0 %v445
        %515 = vmatprep.subr.bf16.mxu0 0
        %516 = vmatpush1.bf16.msra.mxu0 %v446
        %517 = vmatprep.subr.bf16.mxu0 0
        %518 = vmatpush1.bf16.msra.mxu0 %v447
        %519 = vmatprep.subr.bf16.mxu0 0
        %520 = vmatpush1.bf16.msra.mxu0 %v448
        %521 = vmatprep.subr.bf16.mxu0 0
        %522 = vmatpush1.bf16.msra.mxu0 %v449
        %523 = vmatprep.subr.bf16.mxu0 0
        %524 = vmatpush1.bf16.msra.mxu0 %v450
        %525 = vmatprep.subr.bf16.mxu0 0
        %526 = vmatpush1.bf16.msra.mxu0 %v451
        %527 = vmatprep.subr.bf16.mxu0 0
        %528 = vmatpush1.bf16.msra.mxu0 %v452
        %529 = vmatprep.subr.bf16.mxu0 0
        %530 = vmatpush1.bf16.msra.mxu0 %v453
        %531 = vmatprep.subr.bf16.mxu0 0
        %532 = vmatpush1.bf16.msra.mxu0 %v454
        %533 = vmatprep.subr.bf16.mxu0 0
        %534 = vmatpush1.bf16.msra.mxu0 %v455
        %535 = vmatprep.subr.bf16.mxu0 0
        %536 = vmatpush1.bf16.msra.mxu0 %v456
        %537 = vmatprep.mubr.bf16.mxu0 %v306
        %538 = vmatmul.mubr.bf16.gmra.mrb[0].mxu0 %v305
        %v539 = vpop.f32.mrb[0].mxu0
        %v540 = vadd.f32 0.0, %v539
        %v541 = vpop.f32.mrb[0].mxu0
        %v542 = vpop.f32.mrb[0].mxu0
        %v543 = vpop.f32.mrb[0].mxu0
        %544 = vdwg.mxu0
        %545 = vmatprep.subr.bf16.mxu0 0
        %546 = vmatpush1.bf16.msra.mxu0 %v457
        %547 = vmatprep.subr.bf16.mxu0 0
        %548 = vmatpush1.bf16.msra.mxu0 %v458
        %549 = vmatprep.subr.bf16.mxu0 0
        %550 = vmatpush1.bf16.msra.mxu0 %v459
        %551 = vmatprep.subr.bf16.mxu0 0
        %552 = vmatpush1.bf16.msra.mxu0 %v460
        %553 = vmatprep.subr.bf16.mxu0 0
        %554 = vmatpush1.bf16.msra.mxu0 %v461
        %555 = vmatprep.subr.bf16.mxu0 0
        %556 = vmatpush1.bf16.msra.mxu0 %v462
        %557 = vmatprep.subr.bf16.mxu0 0
        %558 = vmatpush1.bf16.msra.mxu0 %v463
        %559 = vmatprep.subr.bf16.mxu0 0
        %560 = vmatpush1.bf16.msra.mxu0 %v464
        %561 = vmatprep.subr.bf16.mxu0 0
        %562 = vmatpush1.bf16.msra.mxu0 %v465
        %563 = vmatprep.subr.bf16.mxu0 0
        %564 = vmatpush1.bf16.msra.mxu0 %v466
        %565 = vmatprep.subr.bf16.mxu0 0
        %566 = vmatpush1.bf16.msra.mxu0 %v467
        %567 = vmatprep.subr.bf16.mxu0 0
        %568 = vmatpush1.bf16.msra.mxu0 %v468
        %569 = vmatprep.subr.bf16.mxu0 0
        %570 = vmatpush1.bf16.msra.mxu0 %v469
        %571 = vmatprep.subr.bf16.mxu0 0
        %572 = vmatpush1.bf16.msra.mxu0 %v470
        %573 = vmatprep.subr.bf16.mxu0 0
        %574 = vmatpush1.bf16.msra.mxu0 %v471
        %575 = vmatprep.subr.bf16.mxu0 0
        %576 = vmatpush1.bf16.msra.mxu0 %v472
        %577 = vmatprep.mubr.bf16.mxu0 %v308
        %578 = vmatmul.mubr.bf16.gmra.mrb[0].mxu0 %v307
        %v579 = vpop.f32.mrb[0].mxu0
        %v580 = vadd.f32 %v540, %v579
        %v581 = vpop.f32.mrb[0].mxu0
        %v582 = vpop.f32.mrb[0].mxu0
        %v583 = vpop.f32.mrb[0].mxu0
        %584 = vdwg.mxu0
        %v585 = vadd.f32 %v232, %v580
        %586 = vst [vmem:[#allocation2] sm:$0xff] %v585
        %p587 = scmp.eq.s32.totalorder %s18, 1
        // Predicated region
        $region45: #{tpu_custom_call.1} parent=35 // pred_check
          %p588 = pneg %p587
        $region46: #{tpu_custom_call.1} parent=35 // pred_check_branch
          %590 = sbr.rel (%p588) target = $region48
        $region47: #{tpu_custom_call.1} parent=35 // pred_region
          %v591 = vld [vmem:[#allocation2] sm:$0xff]
          %v592 = vld [vmem:[%s2] sm:$0xff]
          %v593 = vld [vmem:[%s2 + $0x8] sm:$0xff]
          %v594 = vld [vmem:[%s2 + $0x10] sm:$0xff]
          %v595 = vld [vmem:[%s2 + $0x18] sm:$0xff]
          %v596 = vld [vmem:[%s2 + $0x20] sm:$0xff]
          %v597 = vld [vmem:[%s2 + $0x28] sm:$0xff]
          %v598 = vld [vmem:[%s2 + $0x30] sm:$0xff]
          %v599 = vld [vmem:[%s2 + $0x38] sm:$0xff]
          %v600 = vld [vmem:[%s2 + $0x40] sm:$0xff]
          %v601 = vld [vmem:[%s2 + $0x48] sm:$0xff]
          %v602 = vld [vmem:[%s2 + $0x50] sm:$0xff]
          %v603 = vld [vmem:[%s2 + $0x58] sm:$0xff]
          %v604 = vld [vmem:[%s2 + $0x60] sm:$0xff]
          %v605 = vld [vmem:[%s2 + $0x68] sm:$0xff]
          %v606 = vld [vmem:[%s2 + $0x70] sm:$0xff]
          %v607 = vld [vmem:[%s2 + $0x78] sm:$0xff]
          %v608 = vld [vmem:[%s2 + $0x80] sm:$0x1]
          %v609 = vld [vmem:[%s2 + $0x81] sm:$0x1]
          %610 = vmatprep.subr.mxu0 0.0
          %611 = vmatpush1.msra.mxu0 %v592
          %612 = vmatprep.subr.mxu0 0.0
          %613 = vmatpush1.msra.mxu0 %v593
          %614 = vmatprep.subr.mxu0 0.0
          %615 = vmatpush1.msra.mxu0 %v594
          %616 = vmatprep.subr.mxu0 0.0
          %617 = vmatpush1.msra.mxu0 %v595
          %618 = vmatprep.subr.mxu0 0.0
          %619 = vmatpush1.msra.mxu0 %v596
          %620 = vmatprep.subr.mxu0 0.0
          %621 = vmatpush1.msra.mxu0 %v597
          %622 = vmatprep.subr.mxu0 0.0
          %623 = vmatpush1.msra.mxu0 %v598
          %624 = vmatprep.subr.mxu0 0.0
          %625 = vmatpush1.msra.mxu0 %v599
          %626 = vmatprep.subr.mxu0 0.0
          %627 = vmatpush1.msra.mxu0 %v600
          %628 = vmatprep.subr.mxu0 0.0
          %629 = vmatpush1.msra.mxu0 %v601
          %630 = vmatprep.subr.mxu0 0.0
          %631 = vmatpush1.msra.mxu0 %v602
          %632 = vmatprep.subr.mxu0 0.0
          %633 = vmatpush1.msra.mxu0 %v603
          %634 = vmatprep.subr.mxu0 0.0
          %635 = vmatpush1.msra.mxu0 %v604
          %636 = vmatprep.subr.mxu0 0.0
          %637 = vmatpush1.msra.mxu0 %v605
          %638 = vmatprep.subr.mxu0 0.0
          %639 = vmatpush1.msra.mxu0 %v606
          %640 = vmatprep.subr.mxu0 0.0
          %641 = vmatpush1.msra.mxu0 %v607
          %642 = vmatprep.subr.mxu0 0.0
          %643 = vmatpush1.msra.mxu0 0.0
          %644 = vmatprep.subr.mxu0 0.0
          %645 = vmatpush1.msra.mxu0 0.0
          %646 = vmatprep.subr.mxu0 0.0
          %647 = vmatpush1.msra.mxu0 0.0
          %648 = vmatprep.subr.mxu0 0.0
          %649 = vmatpush1.msra.mxu0 0.0
          %650 = vmatprep.subr.mxu0 0.0
          %651 = vmatpush1.msra.mxu0 0.0
          %652 = vmatprep.subr.mxu0 0.0
          %653 = vmatpush1.msra.mxu0 0.0
          %654 = vmatprep.subr.mxu0 0.0
          %655 = vmatpush1.msra.mxu0 0.0
          %656 = vmatprep.subr.mxu0 0.0
          %657 = vmatpush1.msra.mxu0 0.0
          %658 = vmatprep.subr.mxu0 0.0
          %659 = vmatpush1.msra.mxu0 0.0
          %660 = vmatprep.subr.mxu0 0.0
          %661 = vmatpush1.msra.mxu0 0.0
          %662 = vmatprep.subr.mxu0 0.0
          %663 = vmatpush1.msra.mxu0 0.0
          %664 = vmatprep.subr.mxu0 0.0
          %665 = vmatpush1.msra.mxu0 0.0
          %666 = vmatprep.subr.mxu0 0.0
          %667 = vmatpush1.msra.mxu0 0.0
          %668 = vmatprep.subr.mxu0 0.0
          %669 = vmatpush1.msra.mxu0 0.0
          %670 = vmatprep.subr.mxu0 0.0
          %671 = vmatpush1.msra.mxu0 0.0
          %672 = vmatprep.subr.mxu0 0.0
          %673 = vmatpush1.msra.mxu0 0.0
          %674 = vmatprep.mubr.f32.mxu0 0.0
          %675 = vmatmul.mubr.f32.gmra.mrb[0].mxu0 %v591
          %v676 = vpop.f32.mrb[0].mxu0
          %v677 = vadd.f32 0.0, %v676
          %v678 = vpop.f32.mrb[0].mxu0
          %679 = vdwg.mxu0
          %vm680 = vcmask 523264
          %v681 = vsel %vm680, %v677, 0.0
          %v682 = vrot.slane %v681, 4
          %v683 = vadd.f32 %v681, %v682
          %v684 = vrot.slane %v683, 2
          %v685 = vadd.f32 %v683, %v684
          %v686 = vrot.slane %v685, 1
          %v687 = vadd.f32 %v685, %v686
          %v688 = vrcp.pop 8.0
          %v689 = vmul.f32 %v687, %v688
          %v690 = vsub.f32 %v677, %v689
          %v691 = vmul.f32 %v690, %v690
          %v692 = vsel %vm680, %v691, 0.0
          %v693 = vrot.slane %v692, 4
          %v694 = vadd.f32 %v692, %v693
          %v695 = vrot.slane %v694, 2
          %v696 = vadd.f32 %v694, %v695
          %v697 = vrot.slane %v696, 1
          %v698 = vadd.f32 %v696, %v697
          %v699 = vmul.f32 %v698, %v688
          %v700 = vadd.f32 %v699, 1e-05
          %v701 = vrsqrt.pop %v700
          %v702 = vmul.f32 %v608, %v701
          %v703 = vmul.f32 %v689, %v702
          %v704 = vsub.f32 %v609, %v703
          %v705 = vlaneseq
          %v706 = vshrl.u32 %v705, 7
          %v707 = vsub.s32 0, %v706
          %v708 = vrot.slane %v702, %v707
          %v709 = vmul.f32 %v677, %v708
          %v710 = vlaneseq
          %v711 = vshrl.u32 %v710, 7
          %v712 = vsub.s32 0, %v711
          %v713 = vrot.slane %v704, %v712
          %v714 = vadd.f32 %v709, %v713
          %v715 = vmax.f32 %v714, 0.0
          %v716 = vld [vmem:[%s3] sm:$0xff]
          %v717 = vld [vmem:[%s3 + $0x8] sm:$0xff]
          %v718 = vld [vmem:[%s3 + $0x10] sm:$0xff]
          %v719 = vld [vmem:[%s3 + $0x18] sm:$0xff]
          %v720 = vld [vmem:[%s3 + $0x20] sm:$0xff]
          %v721 = vld [vmem:[%s3 + $0x28] sm:$0xff]
          %v722 = vld [vmem:[%s3 + $0x30] sm:$0xff]
          %v723 = vld [vmem:[%s3 + $0x38] sm:$0xff]
          %v724 = vld [vmem:[%s3 + $0x40] sm:$0x1]
          %v725 = vld [vmem:[%s3 + $0x41] sm:$0x1]
          %v727 = vsel %vm680, %v715, 0
          %729 = vmatprep.subr.mxu0 0.0
          %730 = vmatpush1.msra.mxu0 %v716
          %731 = vmatprep.subr.mxu0 0.0
          %732 = vmatpush1.msra.mxu0 %v717
          %733 = vmatprep.subr.mxu0 0.0
          %734 = vmatpush1.msra.mxu0 %v718
          %735 = vmatprep.subr.mxu0 0.0
          %736 = vmatpush1.msra.mxu0 %v719
          %737 = vmatprep.subr.mxu0 0.0
          %738 = vmatpush1.msra.mxu0 %v720
          %739 = vmatprep.subr.mxu0 0.0
          %740 = vmatpush1.msra.mxu0 %v721
          %741 = vmatprep.subr.mxu0 0.0
          %742 = vmatpush1.msra.mxu0 %v722
          %743 = vmatprep.subr.mxu0 0.0
          %744 = vmatpush1.msra.mxu0 %v723
          %745 = vmatprep.subr.mxu0 0.0
          %746 = vmatpush1.msra.mxu0 0.0
          %747 = vmatprep.subr.mxu0 0.0
          %748 = vmatpush1.msra.mxu0 0.0
          %749 = vmatprep.subr.mxu0 0.0
          %750 = vmatpush1.msra.mxu0 0.0
          %751 = vmatprep.subr.mxu0 0.0
          %752 = vmatpush1.msra.mxu0 0.0
          %753 = vmatprep.subr.mxu0 0.0
          %754 = vmatpush1.msra.mxu0 0.0
          %755 = vmatprep.subr.mxu0 0.0
          %756 = vmatpush1.msra.mxu0 0.0
          %757 = vmatprep.subr.mxu0 0.0
          %758 = vmatpush1.msra.mxu0 0.0
          %759 = vmatprep.subr.mxu0 0.0
          %760 = vmatpush1.msra.mxu0 0.0
          %761 = vmatprep.subr.mxu0 0.0
          %762 = vmatpush1.msra.mxu0 0.0
          %763 = vmatprep.subr.mxu0 0.0
          %764 = vmatpush1.msra.mxu0 0.0
          %765 = vmatprep.subr.mxu0 0.0
          %766 = vmatpush1.msra.mxu0 0.0
          %767 = vmatprep.subr.mxu0 0.0
          %768 = vmatpush1.msra.mxu0 0.0
          %769 = vmatprep.subr.mxu0 0.0
          %770 = vmatpush1.msra.mxu0 0.0
          %771 = vmatprep.subr.mxu0 0.0
          %772 = vmatpush1.msra.mxu0 0.0
          %773 = vmatprep.subr.mxu0 0.0
          %774 = vmatpush1.msra.mxu0 0.0
          %775 = vmatprep.subr.mxu0 0.0
          %776 = vmatpush1.msra.mxu0 0.0
          %777 = vmatprep.subr.mxu0 0.0
          %778 = vmatpush1.msra.mxu0 0.0
          %779 = vmatprep.subr.mxu0 0.0
          %780 = vmatpush1.msra.mxu0 0.0
          %781 = vmatprep.subr.mxu0 0.0
          %782 = vmatpush1.msra.mxu0 0.0
          %783 = vmatprep.subr.mxu0 0.0
          %784 = vmatpush1.msra.mxu0 0.0
          %785 = vmatprep.subr.mxu0 0.0
          %786 = vmatpush1.msra.mxu0 0.0
          %787 = vmatprep.subr.mxu0 0.0
          %788 = vmatpush1.msra.mxu0 0.0
          %789 = vmatprep.subr.mxu0 0.0
          %790 = vmatpush1.msra.mxu0 0.0
          %791 = vmatprep.subr.mxu0 0.0
          %792 = vmatpush1.msra.mxu0 0.0
          %793 = vmatprep.mubr.f32.mxu0 0.0
          %794 = vmatmul.mubr.f32.gmra.mrb[0].mxu0 %v727
          %v795 = vpop.f32.mrb[0].mxu0
          %v796 = vadd.f32 0.0, %v795
          %v797 = vpop.f32.mrb[0].mxu0
          %798 = vdwg.mxu0
          %vm799 = vcmask 15360
          %v800 = vsel %vm799, %v796, 0.0
          %v801 = vrot.slane %v800, 4
          %v802 = vadd.f32 %v800, %v801
          %v803 = vrot.slane %v802, 2
          %v804 = vadd.f32 %v802, %v803
          %v805 = vrot.slane %v804, 1
          %v806 = vadd.f32 %v804, %v805
          %v807 = vmul.f32 %v806, %v688
          %v808 = vsub.f32 %v796, %v807
          %v809 = vmul.f32 %v808, %v808
          %v810 = vsel %vm799, %v809, 0.0
          %v811 = vrot.slane %v810, 4
          %v812 = vadd.f32 %v810, %v811
          %v813 = vrot.slane %v812, 2
          %v814 = vadd.f32 %v812, %v813
          %v815 = vrot.slane %v814, 1
          %v816 = vadd.f32 %v814, %v815
          %v817 = vmul.f32 %v816, %v688
          %v818 = vadd.f32 %v817, 1e-05
          %v819 = vrsqrt.pop %v818
          %v820 = vmul.f32 %v724, %v819
          %v821 = vmul.f32 %v807, %v820
          %v822 = vsub.f32 %v725, %v821
          %v823 = vlaneseq
          %v824 = vshrl.u32 %v823, 7
          %v825 = vsub.s32 0, %v824
          %v826 = vrot.slane %v820, %v825
          %v827 = vmul.f32 %v796, %v826
          %v828 = vlaneseq
          %v829 = vshrl.u32 %v828, 7
          %v830 = vsub.s32 0, %v829
          %v831 = vrot.slane %v822, %v830
          %v832 = vadd.f32 %v827, %v831
          %833 = vst.msk [vmem:[%s4] sm:$0xff] %vm799, %v832
        $region48: #{tpu_custom_call.1} parent=35 // pred_fallthru
          _
        // Predicated region
        $region49: #{tpu_custom_call.1} parent=35 // pred_check
          %p834 = pneg %p125
        $region50: #{tpu_custom_call.1} parent=35 // pred_check_branch
          %836 = sbr.rel (%p834) target = $region52
        $region51: #{tpu_custom_call.1} parent=35 // pred_region
          _
        $region52: #{tpu_custom_call.1} parent=35 // pred_fallthru
          _
        // Predicated region
        $region53: #{tpu_custom_call.1} parent=35 // pred_check
          %p837 = pneg %p125
        $region54: #{tpu_custom_call.1} parent=35 // pred_check_branch
          %839 = sbr.rel (%p837) target = $region56
        $region55: #{tpu_custom_call.1} parent=35 // pred_region
          _
        $region56: #{tpu_custom_call.1} parent=35 // pred_fallthru
          _
      $region36: #{tpu_custom_call.1} parent=5 // pred_fallthru
        _
      %p840 = scmp.le.s32.totalorder 2, %s13
      // Predicated region
      $region57: #{tpu_custom_call.1} parent=5 // pred_check
        %p841 = pneg %p840
      $region58: #{tpu_custom_call.1} parent=5 // pred_check_branch
        %843 = sbr.rel (%p841) target = $region60
      $region59: #{tpu_custom_call.1} parent=5 // pred_region
        %s844 = ssub.s32 %s13, 2
      $region60: #{tpu_custom_call.1} parent=5 // pred_fallthru
        _
    $region6: #{tpu_custom_call.1} parent=1 // loop_footer
      %s17 = sadd.s32 1, %s13
    $region7: #{tpu_custom_call.1} parent=1 // loop_footer_branch
      %12 = sbr.rel target = $region3
    $region8: #{tpu_custom_call.1} parent=1 // loop_exit
      _
    %845 = vsyncpa [#allocation4], 1
    %s846 = scalar_lea.sflag [#allocation4], 1
    %847 = vsyncpa %s846, 1

</llo_original>
